<compile_context>
chip_gen: v6e
topology: v6e:2x2x1
jax: 0.10.0
libtpu: 0.0.40
codegen_flags: <defaults>
</compile_context>

<pallas_src>
import numpy as np
import jax
import jax.numpy as jnp
from jax.experimental import pallas as pl
from jax.experimental.pallas import tpu as pltpu


def make_positional_encoding_table(d_model: int, max_len: int = 1000,
                                   dtype=jnp.float32) -> jnp.ndarray:
    """Build the (max_len, d_model) sinusoidal table (2-D, sublane/lane dense),
    mirroring the PyTorch __init__ (computed in f32, stored in `dtype`)."""
    position = np.arange(0, max_len, dtype=np.float32)[:, None]          # (max_len, 1)
    div_term = np.exp(np.arange(0, d_model, 2, dtype=np.float32)
                      * (-np.log(10000.0) / d_model))                    # (ceil(d/2),)
    pe = np.zeros((max_len, d_model), dtype=np.float32)
    pe[:, 0::2] = np.sin(position * div_term)
    pe[:, 1::2] = np.cos(position * div_term[: pe[:, 1::2].shape[1]])
    return jnp.asarray(pe, dtype=dtype)                                   # (max_len, d_model)


# ---------------------------------------------------------------------------
# Kernels
# ---------------------------------------------------------------------------

def _pe_add_kernel_3d(x_ref, pe_ref, o_ref):
    # x_ref : (ts, B, D) VMEM tile (B >= 8, D % 128 == 0 -> dense slabs)
    # pe_ref: (ts, D)    VMEM tile -- broadcast over batch on the VPU
    o_ref[...] = x_ref[...] + pe_ref[...][:, None, :]


def _make_pe_add_kernel_flat(batch: int):
    """Kernel for the flattened (S, B*D) layout: pe row is replicated `batch`
    times along the lane axis (concat -> XLU/VPU work, free under the HBM
    roofline) and added to the dense (ts, B*D) x block."""
    def kernel(x_ref, pe_ref, o_ref):
        pe_row = pe_ref[...]                                   # (ts, D)
        if batch > 1:
            pe_row = jnp.concatenate([pe_row] * batch, axis=-1)  # (ts, B*D)
        o_ref[...] = x_ref[...] + pe_row
    return kernel


# ---------------------------------------------------------------------------
# Tiling / chip heuristics
# ---------------------------------------------------------------------------

def _default_target_bytes() -> int:
    """Per-x-block byte budget: bigger on chips with faster HBM (amortizes the
    fixed ~0.35 us per-grid-step overhead), conservative on v5e / unknown."""
    try:
        kind = jax.devices()[0].device_kind.lower()
    except Exception:
        return 2 * 1024 * 1024
    if "v7" in kind or "7x" in kind:
        return 5 * 1024 * 1024
    if "v6" in kind:
        return 4 * 1024 * 1024
    return 2 * 1024 * 1024


def _choose_seq_tile(S: int, bytes_per_seq_row: int, target_bytes: int,
                     min_grid_steps: int = 4) -> int:
    """Rows of the sequence axis per block: ~target_bytes per x block, at least
    `min_grid_steps` grid steps when S allows it (double-buffer overlap + v7x
    2-TC split), and sublane-aligned (multiple of 8) when the block is partial
    so the 2-D pe / flattened-x BlockSpecs stay (8,128)-legal."""
    ts = max(1, target_bytes // max(1, bytes_per_seq_row))      # VMEM budget cap
    ts = min(ts, max(1, -(-S // min_grid_steps)))               # keep a few steps
    if ts >= S:
        return S
    ts = max(8, (ts // 8) * 8)                                  # sublane align
    return int(min(ts, S))


# ---------------------------------------------------------------------------
# Forward
# ---------------------------------------------------------------------------

def positional_encoding_forward(x: jnp.ndarray, pe: jnp.ndarray, *,
                                donate_x: bool = False,
                                target_bytes: int | None = None) -> jnp.ndarray:
    """x: (S, B, D); pe: (max_len, D). Returns x + pe[:S] broadcast over B."""
    S, B, D = x.shape
    max_len, pe_d = pe.shape
    if S > max_len:
        raise ValueError(
            f"sequence length {S} exceeds positional-encoding table max_len {max_len}")
    if pe_d != D:
        raise ValueError(f"pe d_model {pe_d} != x d_model {D}")
    if pe.dtype != x.dtype:
        raise ValueError(
            f"pe dtype {pe.dtype} != x dtype {x.dtype}; build the table with "
            f"make_positional_encoding_table(..., dtype=x.dtype)")

    itemsize = jnp.dtype(x.dtype).itemsize
    if target_bytes is None:
        target_bytes = _default_target_bytes()

    ts = _choose_seq_tile(S, B * D * itemsize, target_bytes)
    num_tiles = pl.cdiv(S, ts)

    # Single-block case with S not sublane-aligned: slice pe so its block equals
    # the full array dims (legal BlockSpec). Copies only S*D elements.
    pe_in = pe
    if ts == S and (S % 8 != 0) and (S != max_len):
        pe_in = pe[:S]

    # VMEM limit covering the double-buffered working set (x, out, pe), with
    # headroom; clipped under v7x's 64 MiB physical VMEM.
    x_block_bytes = ts * B * D * itemsize
    pe_block_bytes = ts * D * itemsize
    working_set = 2 * (2 * x_block_bytes + pe_block_bytes)
    vmem_limit = int(min(max(working_set + (4 << 20), 32 << 20), 60 << 20))

    compiler_params = pltpu.CompilerParams(
        # Independent seq tiles -> megacore-shardable on v7x; no-op on 1-TC chips.
        dimension_semantics=("parallel",),
        vmem_limit_bytes=vmem_limit,
    )
    io_alias = {0: 0} if donate_x else {}

    dense_3d = (B >= 8) and (D % 128 == 0)

    if dense_3d:
        # (B, D) slabs are already sublane/lane dense: keep the 3-D layout.
        return pl.pallas_call(
            _pe_add_kernel_3d,
            out_shape=jax.ShapeDtypeStruct((S, B, D), x.dtype),
            grid_spec=pltpu.PrefetchScalarGridSpec(
                num_scalar_prefetch=0,
                grid=(num_tiles,),
                in_specs=[
                    pl.BlockSpec((ts, B, D), lambda i: (i, 0, 0)),
                    pl.BlockSpec((ts, D), lambda i: (i, 0)),
                ],
                out_specs=pl.BlockSpec((ts, B, D), lambda i: (i, 0, 0)),
            ),
            compiler_params=compiler_params,
            input_output_aliases=io_alias,
        )(x, pe_in)

    # Small batch and/or D not a multiple of 128: flatten to (S, B*D) so the
    # last two block dims are dense (unmasked stores, no per-slab sublane pad).
    x2d = x.reshape(S, B * D)
    out2d = pl.pallas_call(
        _make_pe_add_kernel_flat(B),
        out_shape=jax.ShapeDtypeStruct((S, B * D), x.dtype),
        grid_spec=pltpu.PrefetchScalarGridSpec(
            num_scalar_prefetch=0,
            grid=(num_tiles,),
            in_specs=[
                pl.BlockSpec((ts, B * D), lambda i: (i, 0)),
                pl.BlockSpec((ts, D), lambda i: (i, 0)),
            ],
            out_specs=pl.BlockSpec((ts, B * D), lambda i: (i, 0)),
        ),
        compiler_params=compiler_params,
        input_output_aliases=io_alias,
    )(x2d, pe_in)
    return out2d.reshape(S, B, D)


if __name__ == "__main__":
    # Small shapes consistent with the module's forward: (seq, batch, d_model)
    S, B, D = 8, 2, 32
    max_len = 1000

    key = jax.random.PRNGKey(0)
    x = jax.random.normal(key, (S, B, D), dtype=jnp.float32)

    pe = make_positional_encoding_table(D, max_len=max_len, dtype=x.dtype)

    # Reference (plain JAX broadcast add), computed before the kernel call.
    ref = x + pe[:S][:, None, :]

    out = positional_encoding_forward(x, pe)
    out = jax.block_until_ready(out)

    np.testing.assert_allclose(np.asarray(out), np.asarray(ref), rtol=1e-6, atol=1e-6)

    print("KERNEL_OK")
</pallas_src>

<mosaic_0001>
module attributes {stable_mosaic.version = 11 : i64} {
  func.func @kernel(%arg0: i32, %arg1: memref<8x64xf32, #tpu.memory_space<vmem>>, %arg2: memref<8x32xf32, #tpu.memory_space<vmem>>, %arg3: memref<8x64xf32, #tpu.memory_space<vmem>>) attributes {dimension_semantics = [#tpu.dimension_semantics<parallel>], iteration_bounds = array<i64: 1>, scalar_prefetch = 0 : i64, scratch_operands = 0 : i64, tpu.core_type = #tpu.core_type<tc>, window_params = [{transform_indices = @transform_0, window_bounds = array<i64: 8, 64>}, {transform_indices = @transform_1, window_bounds = array<i64: 8, 32>}, {transform_indices = @transform_2, window_bounds = array<i64: 8, 64>}]} {
    %c0 = arith.constant 0 : index
    %c0_0 = arith.constant 0 : index
    %0 = vector.load %arg2[%c0, %c0_0] : memref<8x32xf32, #tpu.memory_space<vmem>>, vector<8x32xf32>
    %1 = tpu.concatenate %0, %0 in 1 : vector<8x32xf32>, vector<8x32xf32> -> vector<8x64xf32>
    %c0_1 = arith.constant 0 : index
    %c0_2 = arith.constant 0 : index
    %2 = vector.load %arg1[%c0_1, %c0_2] : memref<8x64xf32, #tpu.memory_space<vmem>>, vector<8x64xf32>
    %3 = arith.addf %2, %1 : vector<8x64xf32>
    %c0_3 = arith.constant 0 : index
    %c0_4 = arith.constant 0 : index
    %4 = vector.load %arg3[%c0_3, %c0_4] : memref<8x64xf32, #tpu.memory_space<vmem>>, vector<8x64xf32>
    tpu.vector_store %arg3[%c0_3, %c0_4], %3 {strides = array<i32>} : memref<8x64xf32, #tpu.memory_space<vmem>>, vector<8x64xf32>,
    return
  }
  func.func @transform_0(%arg0: i32) -> (i32, i32) {
    %c0_i32 = arith.constant 0 : i32
    %c0_i32_0 = arith.constant 0 : i32
    return %arg0, %c0_i32 : i32, i32
  }
  func.func @transform_1(%arg0: i32) -> (i32, i32) {
    %c0_i32 = arith.constant 0 : i32
    %c0_i32_0 = arith.constant 0 : i32
    return %arg0, %c0_i32 : i32, i32
  }
  func.func @transform_2(%arg0: i32) -> (i32, i32) {
    %c0_i32 = arith.constant 0 : i32
    %c0_i32_0 = arith.constant 0 : i32
    return %arg0, %c0_i32 : i32, i32
  }
}

</mosaic_0001>

<llo_original>
// kernel: tpu_custom_call.1
$region0: #{tpu_custom_call.1}
  #allocation0 [shape = 'u32[]', space=smem, size = 0x4, offset = 0x4, fixed_abs, tag = 'smem constant byte address 0x4 - core index']
  #allocation1 [shape = 'u32[144,128]{1,0:T(1,128)}', space=vmem, size = 0x12000, scoped, tag = 'internal scratch']
  %s0 = inlined_call_operand.vmem [shape: f32[8,64], index: 0, kind: input, shape index: {}]
  %s1 = inlined_call_operand.vmem [shape: f32[1000,32], index: 1, kind: input, shape index: {}]
  %s2 = inlined_call_operand.hbm [shape: f32[8,64], index: 2, kind: output, shape index: {}]
  %s3 = sld [smem:[#allocation0]]
  $region18: #{tpu_custom_call.1} parent=0
    _
  %s5 = ssub.s32 1, %s3
  %s6 = scalar_select 0, %s5, %s3
  $region1: #{tpu_custom_call.1} parent=0
    #allocation2 [shape = 'u8[4096]{0}', space=vmem, size = 0x1000, scoped, tag = 'output window, operand 0, single buffered']
    #allocation3 [shape = 's32[1]{0}', space=sflag, size = 0x4, scoped, tag = 'scoped memory for tpu_custom_call.1']
    %7 = vsyncpa [#allocation3], 0
    // Predicated region
    $region2: #{tpu_custom_call.1} parent=1 // pred_check
      _
    $region3: #{tpu_custom_call.1} parent=1 // pred_check_branch
      %9 = sbr.rel (0) target = $region5
    $region4: #{tpu_custom_call.1} parent=1 // pred_region
      _
    $region5: #{tpu_custom_call.1} parent=1 // pred_fallthru
      _
    // Predicated region
    $region6: #{tpu_custom_call.1} parent=1 // pred_check
      _
    $region7: #{tpu_custom_call.1} parent=1 // pred_check_branch
      %11 = sbr.rel (0) target = $region9
    $region8: #{tpu_custom_call.1} parent=1 // pred_region
      _
    $region9: #{tpu_custom_call.1} parent=1 // pred_fallthru
      _
    %v12 = vld [vmem:[%s1] sm:$0xff]
    %14 = vrot.lane.b32.xlu0 %v12, 32
    %v15 = vpop.permute.xlu0 %14
    %vm17 = vcmask 261120
    %v18 = vsel %vm17, %v12, %v15
    %v19 = vld [vmem:[%s0] sm:$0xff]
    %v20 = vadd.f32 %v19, %v18
    %vm21 = vcmask 523264
    %22 = vst.msk [vmem:[#allocation2] sm:$0xff] %vm21, %v20
    // Predicated region
    $region10: #{tpu_custom_call.1} parent=1 // pred_check
      _
    $region11: #{tpu_custom_call.1} parent=1 // pred_check_branch
      %24 = sbr.rel (0) target = $region13
    $region12: #{tpu_custom_call.1} parent=1 // pred_region
      %s26 = ssub.s32 128, 128
      %27 = vsyncadd [#allocation3], %s26
      %s29 = sshll.u32 [#allocation2], 4
      %s30 = int_to_ptr.vmem [resolvable:$true] %s29
      %32 = dma.vmem_to_hbm [thread:$0]  %s30, 128, %s2, [#allocation3]
    $region13: #{tpu_custom_call.1} parent=1 // pred_fallthru
      _
    // Predicated region
    $region14: #{tpu_custom_call.1} parent=1 // pred_check
      _
    $region15: #{tpu_custom_call.1} parent=1 // pred_check_branch
      %34 = sbr.rel (0) target = $region17
    $region16: #{tpu_custom_call.1} parent=1 // pred_region
      %35 = dma.done [#allocation3], 128
    $region17: #{tpu_custom_call.1} parent=1 // pred_fallthru
      _
    %36 = vsyncpa [#allocation3], 1

</llo_original>
